<compile_context>
chip_gen: v7x
topology: tpu7x:2x2x1
jax: 0.10.0
libtpu: 0.0.40
codegen_flags: <defaults>
</compile_context>

<pallas_src>
import functools

import jax
import jax.numpy as jnp
from jax.experimental import pallas as pl

TOTAL_RELATION_NUM = 51  # same constant role as in the PyTorch source
HIDDEN = 32              # cfg.model.encoder.d_model
LANE = 128               # TPU lane width -> lane-dense key-axis padding


# ----------------------------------------------------------------------------
# Pallas kernel: single-block fused relation-aware alignment.
# Both groups (m2c, m2t) share one key/lane axis: [0, half) = columns,
# [half, 2*half) = tables.  Whole batch in one block (tiny shapes).
# ----------------------------------------------------------------------------
def _fused_alignment_kernel(q_ref, kT_ref, bias_ref, qmask_ref, kmask_ref,
                            out_ref, *, half):
    q = q_ref[...]                              # [B, M, D]   bf16 (pre-scaled)
    kT = kT_ref[...]                            # [B, D, Np2] bf16

    # content term on the MXU: natural [B,M,K] x [B,K,N] batched matmul with
    # the key axis already on lanes (no in-kernel transpose of K).
    content = jnp.einsum("bmd,bdn->bmn", q, kT,
                         preferred_element_type=jnp.float32)     # [B, M, Np2]
    scores = content + bias_ref[...].astype(jnp.float32)

    # rebuild the (separable) attention mask from its two small factors
    qm = qmask_ref[...]                         # [B, M, 1]   f32
    km = kmask_ref[...][:, None, :]             # [B, 1, Np2] f32
    attend = jnp.logical_and(qm > 0.0, km > 0.0)
    scores = jnp.where(attend, scores, jnp.float32(-1e9))
    lane_pad = km < 0.0                         # lane-padding columns

    def _masked_softmax(sc, pad):
        m = jnp.max(sc, axis=-1, keepdims=True)
        e = jnp.exp(sc - m)
        # lane padding -> exactly 0 probability; original batch-padding keeps
        # masked_fill semantics (fully-masked query rows go uniform 1/C).
        e = jnp.where(pad, jnp.float32(0.0), e)
        s = jnp.sum(e, axis=-1, keepdims=True)
        s = jnp.where(s > 0.0, s, jnp.float32(1.0))   # zero-key guard (no NaNs)
        return e * pl.reciprocal(s, approx=True)

    # two softmaxes over static, 128-aligned lane slices (one per group)
    out_ref[:, :, :half] = _masked_softmax(scores[:, :, :half],
                                           lane_pad[:, :, :half])
    out_ref[:, :, half:] = _masked_softmax(scores[:, :, half:],
                                           lane_pad[:, :, half:])


def fused_relation_alignment(q_bf16, keys_T, bias, qmask, kmask, half):
    """q:[B,M,D] bf16, keys_T:[B,D,Np2] bf16, bias:[B,M,Np2] bf16,
    qmask:[B,M,1] f32, kmask:[B,Np2] f32.  Returns [B,M,Np2] f32."""
    B, M, _ = q_bf16.shape
    np2 = keys_T.shape[-1]
    kernel = functools.partial(_fused_alignment_kernel, half=half)
    # Single block, no grid: the whole fused problem (both groups, full batch)
    # is a few tens of KiB, so grid-step / pipelining overhead is pure loss.
    # TODO(synk): for long schemas (half >> 128) or large B*M, add an M-axis
    # 'parallel' grid dim plus a key-axis 'arbitrary' grid dim with an
    # online-softmax VMEM accumulator, sized to stay under ~32 MiB scoped VMEM
    # (this ceiling arrives at half the problem size on v7x's 64 MiB VMEM).
    return pl.pallas_call(
        kernel,
        out_shape=jax.ShapeDtypeStruct((B, M, np2), jnp.float32),
    )(q_bf16, keys_T, bias, qmask, kmask)


# ----------------------------------------------------------------------------
# Pure-JAX reference of the ORIGINAL formulation (test only; materializes the
# [B,M,N,D] relation tensor, which the production path deliberately avoids).
# ----------------------------------------------------------------------------
def _alignment_ref(q, k, rel_k_emb, rel_ids, mask):
    d = q.shape[-1]
    rk = rel_k_emb[rel_ids]                                   # [B,M,N,D]
    content = jnp.einsum("bmd,bnd->bmn", q, k)
    rel = jnp.einsum("bmd,bmnd->bmn", q, rk)
    scores = (content + rel) / jnp.sqrt(jnp.float32(d))
    scores = jnp.where(mask > 0.0, scores, -1e9)
    return jax.nn.softmax(scores, axis=-1)


# ----------------------------------------------------------------------------
# Text2SQLModel glue (deterministic synthetic parameters / stand-ins)
# ----------------------------------------------------------------------------
class Text2SQLModelPallas:
    def __init__(self, key):
        k1, k2, k3, k4, k5 = jax.random.split(key, 5)
        # TODO(synk): encoder/decoder are injected external modules in PyTorch;
        # only deterministic stand-ins are provided here.
        self.tok_emb = jax.random.normal(k1, (64, HIDDEN), jnp.float32) * 0.1
        self.enc_w = jax.random.normal(k2, (HIDDEN, HIDDEN), jnp.float32) * 0.1
        # module-owned parameters
        self.rel_k_emb = jax.random.normal(
            k3, (TOTAL_RELATION_NUM, HIDDEN), jnp.float32) * 0.1
        # relation_v feeds only the context vector, which weight_only=True
        # discards; kept for parameter parity, never gathered.
        self.rel_v_emb = jax.random.normal(
            k4, (TOTAL_RELATION_NUM, HIDDEN), jnp.float32) * 0.1
        # mem_attn_linears exist in __init__ but are unused in the shown
        # forward path; initialized for shape parity only.
        self.mem_attn_linears = [
            jax.random.normal(k, (HIDDEN, HIDDEN), jnp.float32) * 0.1
            for k in jax.random.split(k5, 2)
        ]
        # TODO(synk): mem_attn_dropout -> identity (eval-mode semantics).

    def encoder(self, input_token):
        # [B, S] int -> [B, S, D]
        return jnp.tanh(self.tok_emb[input_token] @ self.enc_w)

    # vectorized replacement of the per-batch Python slicing loop
    def _build_memories(self, enc_out, lens, M, C, T):
        B, S, D = enc_out.shape
        if S < M:
            enc_out = jnp.pad(enc_out, ((0, 0), (0, M - S), (0, 0)))
        nl, nc, nt = lens[:, 0], lens[:, 1], lens[:, 2]
        tot = nl + nc + nt
        S_full = enc_out.shape[1]

        pos_m = jax.lax.broadcasted_iota(jnp.int32, (B, M), 1)
        all_mask = (pos_m < tot[:, None]).astype(jnp.float32)
        all_mem = enc_out[:, :M, :] * all_mask[:, :, None]

        pos_c = jax.lax.broadcasted_iota(jnp.int32, (B, C), 1)
        col_mask = (pos_c < nc[:, None]).astype(jnp.float32)
        col_idx = jnp.clip(nl[:, None] + pos_c, 0, S_full - 1)
        col_mem = jnp.take_along_axis(enc_out, col_idx[:, :, None], axis=1)
        col_mem = col_mem * col_mask[:, :, None]

        pos_t = jax.lax.broadcasted_iota(jnp.int32, (B, T), 1)
        tab_mask = (pos_t < nt[:, None]).astype(jnp.float32)
        tab_idx = jnp.clip((nl + nc)[:, None] + pos_t, 0, S_full - 1)
        tab_mem = jnp.take_along_axis(enc_out, tab_idx[:, :, None], axis=1)
        tab_mem = tab_mem * tab_mask[:, :, None]

        return all_mem, col_mem, tab_mem, all_mask, col_mask, tab_mask

    def compute_alignment_matrices(self, enc_out, lens, rel_mc_ids, rel_mt_ids,
                                   M, C, T):
        (all_mem, col_mem, tab_mem,
         all_mask, col_mask, tab_mask) = self._build_memories(
             enc_out, lens, M, C, T)
        B, _, D = all_mem.shape

        # fold 1/sqrt(D) into q (and hence into the relation bias) at build time
        q_scaled = all_mem * jnp.float32(1.0 / (D ** 0.5))

        # relation term without the [B,M,N,D] tensor: one small matmul + gather
        q_rel = jnp.einsum("bmd,rd->bmr", q_scaled, self.rel_k_emb)   # [B,M,51]
        rel_bias_c = jnp.take_along_axis(q_rel, rel_mc_ids, axis=-1)  # [B,M,C]
        rel_bias_t = jnp.take_along_axis(q_rel, rel_mt_ids, axis=-1)  # [B,M,T]

        # both groups fused along the key/lane axis: cols at [0,half),
        # tables at [half, 2*half); half is a multiple of 128 (lane-dense).
        half = max(LANE, -(-max(C, T) // LANE) * LANE)
        np2 = 2 * half

        # keys pre-transposed to [B, D, Np2] (key axis on lanes), built
        # directly at padded shape (no pad-then-stack chains).
        keys_T = jnp.zeros((B, D, np2), jnp.bfloat16)
        keys_T = keys_T.at[:, :, :C].set(
            jnp.swapaxes(col_mem, 1, 2).astype(jnp.bfloat16))
        keys_T = keys_T.at[:, :, half:half + T].set(
            jnp.swapaxes(tab_mem, 1, 2).astype(jnp.bfloat16))

        # relation bias shipped as bf16 (halves the largest per-(m,n) stream)
        bias = jnp.zeros((B, M, np2), jnp.bfloat16)
        bias = bias.at[:, :, :C].set(rel_bias_c.astype(jnp.bfloat16))
        bias = bias.at[:, :, half:half + T].set(rel_bias_t.astype(jnp.bfloat16))

        # factored masks: the dense [B,M,Np] mask is an outer product of these
        # two small vectors and is rebuilt in-kernel.
        #   qmask: 1 = real query row, 0 = padded query row
        #   kmask: 1 = real key, 0 = batch-pad key (-1e9 fill), -1 = lane pad
        qmask = all_mask[:, :, None]                                  # [B,M,1]
        kmask = jnp.full((B, np2), -1.0, jnp.float32)
        kmask = kmask.at[:, :C].set(col_mask)
        kmask = kmask.at[:, half:half + T].set(tab_mask)

        out = fused_relation_alignment(q_scaled.astype(jnp.bfloat16),
                                       keys_T, bias, qmask, kmask, half)
        m2c = out[:, :, :C]
        m2t = out[:, :, half:half + T]
        return m2c, m2t

    def forward(self, input_token, lens, rel_mc_ids, rel_mt_ids, M, C, T):
        enc_out = self.encoder(input_token)
        m2c, m2t = self.compute_alignment_matrices(
            enc_out, lens, rel_mc_ids, rel_mt_ids, M, C, T)
        # TODO(synk): decoder is an injected module; return alignments.
        return m2c, m2t


# ----------------------------------------------------------------------------
if __name__ == "__main__":
    key = jax.random.PRNGKey(0)
    model = Text2SQLModelPallas(key)

    B, S_in = 2, 18
    M, C, T = 16, 8, 8                       # padded all / column / table lens
    lens = jnp.array([[6, 5, 3], [5, 4, 3]], jnp.int32)   # (nl, n_col, n_tab)

    k_tok, k_mc, k_mt = jax.random.split(jax.random.PRNGKey(0), 3)
    input_token = jax.random.randint(k_tok, (B, S_in), 0, 64)
    rel_mc_ids = jax.random.randint(k_mc, (B, M, C), 0, TOTAL_RELATION_NUM)
    rel_mt_ids = jax.random.randint(k_mt, (B, M, T), 0, TOTAL_RELATION_NUM)

    fwd = jax.jit(model.forward, static_argnums=(4, 5, 6))
    m2c, m2t = fwd(input_token, lens, rel_mc_ids, rel_mt_ids, M, C, T)
    jax.block_until_ready((m2c, m2t))
    assert m2c.shape == (B, M, C) and m2t.shape == (B, M, T)

    # correctness check vs. the original (f32, unfused) formulation -- kept out
    # of the forward path so forward stays jit-able and sync-free.
    enc_out = model.encoder(input_token)
    (all_mem, col_mem, tab_mem,
     all_mask, col_mask, tab_mask) = model._build_memories(enc_out, lens,
                                                           M, C, T)
    m2c_mask = all_mask[:, :, None] * col_mask[:, None, :]
    m2t_mask = all_mask[:, :, None] * tab_mask[:, None, :]
    ref_c = _alignment_ref(all_mem, col_mem, model.rel_k_emb, rel_mc_ids,
                           m2c_mask)
    ref_t = _alignment_ref(all_mem, tab_mem, model.rel_k_emb, rel_mt_ids,
                           m2t_mask)
    # bf16 MXU inputs + bf16 bias + approx reciprocal -> compare at 1e-2
    assert jnp.allclose(m2c, ref_c, atol=1e-2, rtol=1e-2)
    assert jnp.allclose(m2t, ref_t, atol=1e-2, rtol=1e-2)
    # softmax rows sum to ~1 (fully-masked rows stay uniform 1/C like PyTorch)
    assert jnp.allclose(m2c.sum(-1), 1.0, atol=1e-2)
    assert jnp.allclose(m2t.sum(-1), 1.0, atol=1e-2)
    print("KERNEL_OK")
</pallas_src>

<mosaic_0001>
module attributes {stable_mosaic.version = 11 : i64} {
  func.func @_fused_alignment_kernel(%arg0: memref<2x16x32xbf16, #tpu.memory_space<vmem>>, %arg1: memref<2x32x256xbf16, #tpu.memory_space<vmem>>, %arg2: memref<2x16x256xbf16, #tpu.memory_space<vmem>>, %arg3: memref<2x16x1xf32, #tpu.memory_space<vmem>>, %arg4: memref<2x256xf32, #tpu.memory_space<vmem>>, %arg5: memref<2x16x256xf32, #tpu.memory_space<vmem>>) attributes {dimension_semantics = [], scalar_prefetch = 0 : i64, scratch_operands = 0 : i64, tpu.core_type = #tpu.core_type<tc>} {
    %c0 = arith.constant 0 : index
    %c0_0 = arith.constant 0 : index
    %c0_1 = arith.constant 0 : index
    %0 = vector.load %arg0[%c0, %c0_0, %c0_1] : memref<2x16x32xbf16, #tpu.memory_space<vmem>>, vector<2x16x32xbf16>
    %c0_2 = arith.constant 0 : index
    %c0_3 = arith.constant 0 : index
    %c0_4 = arith.constant 0 : index
    %1 = vector.load %arg1[%c0_2, %c0_3, %c0_4] : memref<2x32x256xbf16, #tpu.memory_space<vmem>>, vector<2x32x256xbf16>
    "tpu.trace_start"() <{level = 10 : i32, message = "bmd,bdn->bmn"}> : () -> ()
    %cst = arith.constant dense<0.000000e+00> : vector<2x16x256xf32>
    %2 = tpu.matmul %0, %1, %cst {dimension_numbers = #tpu.dot_dimension_numbers<[2], [1], [1], [2], [0, 0, 0, 1, 1, 2], [0], [0]>} : vector<2x16x32xbf16>, vector<2x32x256xbf16>, vector<2x16x256xf32> -> vector<2x16x256xf32>
    "tpu.trace_stop"() : () -> ()
    %c0_5 = arith.constant 0 : index
    %c0_6 = arith.constant 0 : index
    %c0_7 = arith.constant 0 : index
    %3 = vector.load %arg2[%c0_5, %c0_6, %c0_7] : memref<2x16x256xbf16, #tpu.memory_space<vmem>>, vector<2x16x256xbf16>
    %4 = arith.extf %3 : vector<2x16x256xbf16> to vector<2x16x256xf32>
    %5 = arith.addf %2, %4 : vector<2x16x256xf32>
    %c0_8 = arith.constant 0 : index
    %c0_9 = arith.constant 0 : index
    %c0_10 = arith.constant 0 : index
    %6 = vector.load %arg3[%c0_8, %c0_9, %c0_10] : memref<2x16x1xf32, #tpu.memory_space<vmem>>, vector<2x16x1xf32>
    %c0_11 = arith.constant 0 : index
    %c0_12 = arith.constant 0 : index
    %7 = vector.load %arg4[%c0_11, %c0_12] : memref<2x256xf32, #tpu.memory_space<vmem>>, vector<2x256xf32>
    %8 = vector.shape_cast %7 : vector<2x256xf32> to vector<2x1x256xf32>
    %cst_13 = arith.constant 0.000000e+00 : f32
    %9 = vector.broadcast %cst_13 : f32 to vector<2x16x1xf32>
    %10 = arith.cmpf ogt, %6, %9 : vector<2x16x1xf32>
    %cst_14 = arith.constant 0.000000e+00 : f32
    %11 = vector.broadcast %cst_14 : f32 to vector<2x1x256xf32>
    %12 = arith.cmpf ogt, %8, %11 : vector<2x1x256xf32>
    %13 = vector.broadcast %10 : vector<2x16x1xi1> to vector<2x16x256xi1>
    %14 = vector.broadcast %12 : vector<2x1x256xi1> to vector<2x16x256xi1>
    %15 = arith.andi %13, %14 : vector<2x16x256xi1>
    %cst_15 = arith.constant -1.000000e+09 : f32
    %16 = vector.broadcast %cst_15 : f32 to vector<2x16x256xf32>
    %17 = arith.select %15, %5, %16 : vector<2x16x256xi1>, vector<2x16x256xf32>
    %cst_16 = arith.constant 0.000000e+00 : f32
    %18 = vector.broadcast %cst_16 : f32 to vector<2x1x256xf32>
    %19 = arith.cmpf olt, %8, %18 : vector<2x1x256xf32>
    %20 = vector.extract_strided_slice %17 {offsets = [0, 0, 0], sizes = [2, 16, 128], strides = [1, 1, 1]} : vector<2x16x256xf32> to vector<2x16x128xf32>
    %21 = vector.extract_strided_slice %19 {offsets = [0, 0, 0], sizes = [2, 1, 128], strides = [1, 1, 1]} : vector<2x1x256xi1> to vector<2x1x128xi1>
    %cst_17 = arith.constant dense<0xFF800000> : vector<2x16xf32>
    %22 = vector.multi_reduction <maximumf>, %20, %cst_17 [2] : vector<2x16x128xf32> to vector<2x16xf32>
    %23 = vector.shape_cast %22 : vector<2x16xf32> to vector<2x16x1xf32>
    %24 = vector.broadcast %23 : vector<2x16x1xf32> to vector<2x16x128xf32>
    %25 = arith.subf %20, %24 : vector<2x16x128xf32>
    %26 = math.exp %25 : vector<2x16x128xf32>
    %cst_18 = arith.constant 0.000000e+00 : f32
    %27 = vector.shape_cast %21 : vector<2x1x128xi1> to vector<2x1x128xi1>
    %28 = vector.broadcast %27 : vector<2x1x128xi1> to vector<2x16x128xi1>
    %29 = vector.broadcast %cst_18 : f32 to vector<2x16x128xf32>
    %30 = arith.select %28, %29, %26 : vector<2x16x128xi1>, vector<2x16x128xf32>
    %cst_19 = arith.constant dense<0.000000e+00> : vector<2x16xf32>
    %31 = vector.multi_reduction <add>, %30, %cst_19 [2] : vector<2x16x128xf32> to vector<2x16xf32>
    %32 = vector.shape_cast %31 : vector<2x16xf32> to vector<2x16x1xf32>
    %cst_20 = arith.constant 0.000000e+00 : f32
    %33 = vector.broadcast %cst_20 : f32 to vector<2x16x1xf32>
    %34 = arith.cmpf ogt, %32, %33 : vector<2x16x1xf32>
    %cst_21 = arith.constant 1.000000e+00 : f32
    %35 = vector.broadcast %cst_21 : f32 to vector<2x16x1xf32>
    %36 = arith.select %34, %32, %35 : vector<2x16x1xi1>, vector<2x16x1xf32>
    %37 = tpu.reciprocal %36 {approx = true} : vector<2x16x1xf32> -> vector<2x16x1xf32>
    %38 = vector.broadcast %37 : vector<2x16x1xf32> to vector<2x16x128xf32>
    %39 = arith.mulf %30, %38 : vector<2x16x128xf32>
    %c0_22 = arith.constant 0 : index
    %c0_23 = arith.constant 0 : index
    %c0_24 = arith.constant 0 : index
    %40 = vector.load %arg5[%c0_22, %c0_23, %c0_24] : memref<2x16x256xf32, #tpu.memory_space<vmem>>, vector<2x16x128xf32>
    tpu.vector_store %arg5[%c0_22, %c0_23, %c0_24], %39 {strides = array<i32>} : memref<2x16x256xf32, #tpu.memory_space<vmem>>, vector<2x16x128xf32>,
    %41 = vector.extract_strided_slice %17 {offsets = [0, 0, 128], sizes = [2, 16, 128], strides = [1, 1, 1]} : vector<2x16x256xf32> to vector<2x16x128xf32>
    %42 = vector.extract_strided_slice %19 {offsets = [0, 0, 128], sizes = [2, 1, 128], strides = [1, 1, 1]} : vector<2x1x256xi1> to vector<2x1x128xi1>
    %cst_25 = arith.constant dense<0xFF800000> : vector<2x16xf32>
    %43 = vector.multi_reduction <maximumf>, %41, %cst_25 [2] : vector<2x16x128xf32> to vector<2x16xf32>
    %44 = vector.shape_cast %43 : vector<2x16xf32> to vector<2x16x1xf32>
    %45 = vector.broadcast %44 : vector<2x16x1xf32> to vector<2x16x128xf32>
    %46 = arith.subf %41, %45 : vector<2x16x128xf32>
    %47 = math.exp %46 : vector<2x16x128xf32>
    %cst_26 = arith.constant 0.000000e+00 : f32
    %48 = vector.shape_cast %42 : vector<2x1x128xi1> to vector<2x1x128xi1>
    %49 = vector.broadcast %48 : vector<2x1x128xi1> to vector<2x16x128xi1>
    %50 = vector.broadcast %cst_26 : f32 to vector<2x16x128xf32>
    %51 = arith.select %49, %50, %47 : vector<2x16x128xi1>, vector<2x16x128xf32>
    %cst_27 = arith.constant dense<0.000000e+00> : vector<2x16xf32>
    %52 = vector.multi_reduction <add>, %51, %cst_27 [2] : vector<2x16x128xf32> to vector<2x16xf32>
    %53 = vector.shape_cast %52 : vector<2x16xf32> to vector<2x16x1xf32>
    %cst_28 = arith.constant 0.000000e+00 : f32
    %54 = vector.broadcast %cst_28 : f32 to vector<2x16x1xf32>
    %55 = arith.cmpf ogt, %53, %54 : vector<2x16x1xf32>
    %cst_29 = arith.constant 1.000000e+00 : f32
    %56 = vector.broadcast %cst_29 : f32 to vector<2x16x1xf32>
    %57 = arith.select %55, %53, %56 : vector<2x16x1xi1>, vector<2x16x1xf32>
    %58 = tpu.reciprocal %57 {approx = true} : vector<2x16x1xf32> -> vector<2x16x1xf32>
    %59 = vector.broadcast %58 : vector<2x16x1xf32> to vector<2x16x128xf32>
    %60 = arith.mulf %51, %59 : vector<2x16x128xf32>
    %c0_30 = arith.constant 0 : index
    %c0_31 = arith.constant 0 : index
    %c128 = arith.constant 128 : index
    %61 = vector.load %arg5[%c0_30, %c0_31, %c128] : memref<2x16x256xf32, #tpu.memory_space<vmem>>, vector<2x16x128xf32>
    tpu.vector_store %arg5[%c0_30, %c0_31, %c128], %60 {strides = array<i32>} : memref<2x16x256xf32, #tpu.memory_space<vmem>>, vector<2x16x128xf32>,
    return
  }
}

</mosaic_0001>

<llo_original>
// kernel: forward.1
$region0: #{forward.1}
  #allocation0 [shape = 'u32[]', space=smem, size = 0x4, offset = 0x4, fixed_abs, tag = 'smem constant byte address 0x4 - core index']
  #allocation1 [shape = 'u32[144,128]{1,0:T(1,128)}', space=vmem, size = 0x12000, scoped, tag = 'internal scratch']
  %s0 = inlined_call_operand.vmem [shape: bf16[2,16,32], index: 0, kind: input, shape index: {}]
  %s1 = inlined_call_operand.vmem [shape: bf16[2,32,256], index: 1, kind: input, shape index: {}]
  %s2 = inlined_call_operand.vmem [shape: bf16[2,16,256], index: 2, kind: input, shape index: {}]
  %s3 = inlined_call_operand.vmem [shape: f32[2,16,1], index: 3, kind: input, shape index: {}]
  %s4 = inlined_call_operand.vmem [shape: f32[2,256], index: 4, kind: input, shape index: {}]
  %s5 = inlined_call_operand.vmem [shape: f32[2,16,256], index: 5, kind: output, shape index: {}]
  %s6 = sld [smem:[#allocation0]]
  $region30: #{forward.1} parent=0
    _
  %s8 = ssub.s32 1, %s6
  %s9 = scalar_select 0, %s8, %s6
  // Predicated region
  $region2: #{forward.1} parent=0 // pred_check
    _
  $region3: #{forward.1} parent=0 // pred_check_branch
    %11 = sbr.rel (0) target = $region5
  $region4: #{forward.1} parent=0 // pred_region
    _
  $region5: #{forward.1} parent=0 // pred_fallthru
    _
  // Predicated region
  $region6: #{forward.1} parent=0 // pred_check
    _
  $region7: #{forward.1} parent=0 // pred_check_branch
    %13 = sbr.rel (0) target = $region9
  $region8: #{forward.1} parent=0 // pred_region
    _
  $region9: #{forward.1} parent=0 // pred_fallthru
    _
  // Predicated region
  $region10: #{forward.1} parent=0 // pred_check
    _
  $region11: #{forward.1} parent=0 // pred_check_branch
    %15 = sbr.rel (0) target = $region13
  $region12: #{forward.1} parent=0 // pred_region
    _
  $region13: #{forward.1} parent=0 // pred_fallthru
    _
  // Predicated region
  $region14: #{forward.1} parent=0 // pred_check
    _
  $region15: #{forward.1} parent=0 // pred_check_branch
    %17 = sbr.rel (0) target = $region17
  $region16: #{forward.1} parent=0 // pred_region
    _
  $region17: #{forward.1} parent=0 // pred_fallthru
    _
  // Predicated region
  $region18: #{forward.1} parent=0 // pred_check
    _
  $region19: #{forward.1} parent=0 // pred_check_branch
    %19 = sbr.rel (0) target = $region21
  $region20: #{forward.1} parent=0 // pred_region
    _
  $region21: #{forward.1} parent=0 // pred_fallthru
    _
  %v21 = vld [vmem:[%s0] sm:$0xf]
  %v22 = vld [vmem:[%s0 + $0x4] sm:$0xf]
  %v23 = vld [vmem:[%s0 + $0x8] sm:$0xf]
  %v24 = vld [vmem:[%s0 + $0xc] sm:$0xf]
  %v25 = vld [vmem:[%s1] sm:$0xff]
  %v26 = vld [vmem:[%s1 + $0x8] sm:$0xff]
  %v27 = vld [vmem:[%s1 + $0x10] sm:$0xff]
  %v28 = vld [vmem:[%s1 + $0x18] sm:$0xff]
  %v29 = vld [vmem:[%s1 + $0x20] sm:$0xff]
  %v30 = vld [vmem:[%s1 + $0x28] sm:$0xff]
  %v31 = vld [vmem:[%s1 + $0x30] sm:$0xff]
  %v32 = vld [vmem:[%s1 + $0x38] sm:$0xff]
  %v33 = vld [vmem:[%s2] sm:$0xff]
  %v34 = vld [vmem:[%s2 + $0x8] sm:$0xff]
  %v35 = vld [vmem:[%s2 + $0x10] sm:$0xff]
  %v36 = vld [vmem:[%s2 + $0x18] sm:$0xff]
  %v37 = vunpack.c.l.bf16 %v33
  %v38 = vunpack.c.h.bf16 %v33
  %v39 = vunpack.c.l.bf16 %v34
  %v40 = vunpack.c.h.bf16 %v34
  %v41 = vunpack.c.l.bf16 %v35
  %v42 = vunpack.c.h.bf16 %v35
  %v43 = vunpack.c.l.bf16 %v36
  %v44 = vunpack.c.h.bf16 %v36
  %v47 = vunpack.c.l.b16 %v21
  %v48 = vunpack.c.l.b16 %v22
  %v49 = vpack.c.b16 %v48, %v47
  %v54 = vunpack.c.l.b16 %v25
  %v55 = vunpack.c.h.b16 %v25
  %v56 = vunpack.c.l.b16 %v26
  %v57 = vunpack.c.h.b16 %v26
  %v58 = vunpack.c.l.b16 %v27
  %v59 = vunpack.c.h.b16 %v27
  %v60 = vunpack.c.l.b16 %v28
  %v61 = vunpack.c.h.b16 %v28
  %v62 = vpack.c.b16 %v56, %v54
  %v63 = vpack.c.b16 %v57, %v55
  %v64 = vpack.c.b16 %v60, %v58
  %v65 = vpack.c.b16 %v61, %v59
  %vm70 = vcmask 261120
  %v72 = vsel %vm70, %v49, 0
  %74 = vmatprep.subr.bf16.mxu0 %v63
  %75 = vmatpush1.bf16.msra.mxu0 %v62
  %76 = vmatprep.subr.bf16.mxu0 %v65
  %77 = vmatpush1.bf16.msra.mxu0 %v64
  %78 = vmatprep.subr.bf16.mxu0 0
  %79 = vmatpush1.bf16.msra.mxu0 0
  %80 = vmatprep.subr.bf16.mxu0 0
  %81 = vmatpush1.bf16.msra.mxu0 0
  %82 = vmatprep.subr.bf16.mxu0 0
  %83 = vmatpush1.bf16.msra.mxu0 0
  %84 = vmatprep.subr.bf16.mxu0 0
  %85 = vmatpush1.bf16.msra.mxu0 0
  %86 = vmatprep.subr.bf16.mxu0 0
  %87 = vmatpush1.bf16.msra.mxu0 0
  %88 = vmatprep.subr.bf16.mxu0 0
  %89 = vmatpush1.bf16.msra.mxu0 0
  %90 = vmatprep.subr.bf16.mxu0 0
  %91 = vmatpush1.bf16.msra.mxu0 0
  %92 = vmatprep.subr.bf16.mxu0 0
  %93 = vmatpush1.bf16.msra.mxu0 0
  %94 = vmatprep.subr.bf16.mxu0 0
  %95 = vmatpush1.bf16.msra.mxu0 0
  %96 = vmatprep.subr.bf16.mxu0 0
  %97 = vmatpush1.bf16.msra.mxu0 0
  %98 = vmatprep.subr.bf16.mxu0 0
  %99 = vmatpush1.bf16.msra.mxu0 0
  %100 = vmatprep.subr.bf16.mxu0 0
  %101 = vmatpush1.bf16.msra.mxu0 0
  %102 = vmatprep.subr.bf16.mxu0 0
  %103 = vmatpush1.bf16.msra.mxu0 0
  %104 = vmatprep.subr.bf16.mxu0 0
  %105 = vmatpush1.bf16.msra.mxu0 0
  %106 = vmatprep.mubr.bf16.mxu0 0
  %107 = vmatmul.mubr.bf16.gmra.mrb[0].mxu0 %v72
  %v108 = vpop.f32.mrb[0].mxu0
  %v109 = vadd.f32 %v37, %v108
  %v110 = vpop.f32.mrb[0].mxu0
  %v111 = vadd.f32 %v38, %v110
  %v112 = vpop.f32.mrb[0].mxu0
  %v113 = vadd.f32 %v39, %v112
  %v114 = vpop.f32.mrb[0].mxu0
  %v115 = vadd.f32 %v40, %v114
  %116 = vdwg.mxu0
  %v119 = vunpack.c.l.b16 %v23
  %v120 = vunpack.c.l.b16 %v24
  %v121 = vpack.c.b16 %v120, %v119
  %v126 = vunpack.c.l.b16 %v29
  %v127 = vunpack.c.h.b16 %v29
  %v128 = vunpack.c.l.b16 %v30
  %v129 = vunpack.c.h.b16 %v30
  %v130 = vunpack.c.l.b16 %v31
  %v131 = vunpack.c.h.b16 %v31
  %v132 = vunpack.c.l.b16 %v32
  %v133 = vunpack.c.h.b16 %v32
  %v134 = vpack.c.b16 %v128, %v126
  %v135 = vpack.c.b16 %v129, %v127
  %v136 = vpack.c.b16 %v132, %v130
  %v137 = vpack.c.b16 %v133, %v131
  %v143 = vsel %vm70, %v121, 0
  %145 = vmatprep.subr.bf16.mxu0 %v135
  %146 = vmatpush1.bf16.msra.mxu0 %v134
  %147 = vmatprep.subr.bf16.mxu0 %v137
  %148 = vmatpush1.bf16.msra.mxu0 %v136
  %149 = vmatprep.subr.bf16.mxu0 0
  %150 = vmatpush1.bf16.msra.mxu0 0
  %151 = vmatprep.subr.bf16.mxu0 0
  %152 = vmatpush1.bf16.msra.mxu0 0
  %153 = vmatprep.subr.bf16.mxu0 0
  %154 = vmatpush1.bf16.msra.mxu0 0
  %155 = vmatprep.subr.bf16.mxu0 0
  %156 = vmatpush1.bf16.msra.mxu0 0
  %157 = vmatprep.subr.bf16.mxu0 0
  %158 = vmatpush1.bf16.msra.mxu0 0
  %159 = vmatprep.subr.bf16.mxu0 0
  %160 = vmatpush1.bf16.msra.mxu0 0
  %161 = vmatprep.subr.bf16.mxu0 0
  %162 = vmatpush1.bf16.msra.mxu0 0
  %163 = vmatprep.subr.bf16.mxu0 0
  %164 = vmatpush1.bf16.msra.mxu0 0
  %165 = vmatprep.subr.bf16.mxu0 0
  %166 = vmatpush1.bf16.msra.mxu0 0
  %167 = vmatprep.subr.bf16.mxu0 0
  %168 = vmatpush1.bf16.msra.mxu0 0
  %169 = vmatprep.subr.bf16.mxu0 0
  %170 = vmatpush1.bf16.msra.mxu0 0
  %171 = vmatprep.subr.bf16.mxu0 0
  %172 = vmatpush1.bf16.msra.mxu0 0
  %173 = vmatprep.subr.bf16.mxu0 0
  %174 = vmatpush1.bf16.msra.mxu0 0
  %175 = vmatprep.subr.bf16.mxu0 0
  %176 = vmatpush1.bf16.msra.mxu0 0
  %177 = vmatprep.mubr.bf16.mxu0 0
  %178 = vmatmul.mubr.bf16.gmra.mrb[0].mxu0 %v143
  %v179 = vpop.f32.mrb[0].mxu0
  %v180 = vadd.f32 %v41, %v179
  %v181 = vpop.f32.mrb[0].mxu0
  %v182 = vadd.f32 %v42, %v181
  %v183 = vpop.f32.mrb[0].mxu0
  %v184 = vadd.f32 %v43, %v183
  %v185 = vpop.f32.mrb[0].mxu0
  %v186 = vadd.f32 %v44, %v185
  %187 = vdwg.mxu0
  %v188 = vld [vmem:[%s3] sm:$0xff]
  %v189 = vld [vmem:[%s3 + $0x8] sm:$0xff]
  %v190 = vld [vmem:[%s3 + $0x10] sm:$0xff]
  %v191 = vld [vmem:[%s3 + $0x18] sm:$0xff]
  %v192 = vld [vmem:[%s4] sm:$0xf]
  %v195 = vunpack.c.l.s4 1966171168
  %v196 = vunpack.c.0.s8 %v195
  %v197 = vlaneseq
  %v198 = vshrl.u32 %v197, 7
  %v199 = vsub.s32 %v196, %v198
  %v200 = vrot.slane %v192, %v199
  %v201 = vcombine.high %v200, %v200
  %vm204 = vcmp.gt.f32.partialorder %v188, 0.0
  %vm205 = vcmp.gt.f32.partialorder %v189, 0.0
  %vm206 = vcmp.gt.f32.partialorder %v190, 0.0
  %vm207 = vcmp.gt.f32.partialorder %v191, 0.0
  %vm208 = vcmp.gt.f32.partialorder %v200, 0.0
  %vm209 = vcmp.gt.f32.partialorder %v201, 0.0
  %v210 = vsel %vm204, 1, 0
  %v211 = vsel %vm205, 1, 0
  %v212 = vsel %vm206, 1, 0
  %v213 = vsel %vm207, 1, 0
  %214 = vset.pattern.permute.xlu0 0
  %215 = vperm.xlu0 %214, %v210
  %v216 = vpop.permute.xlu0 %215
  %217 = vset.pattern.permute.xlu0 0
  %218 = vperm.xlu0 %217, %v211
  %v219 = vpop.permute.xlu0 %218
  %220 = vset.pattern.permute.xlu0 0
  %221 = vperm.xlu0 %220, %v212
  %v222 = vpop.permute.xlu0 %221
  %223 = vset.pattern.permute.xlu0 0
  %224 = vperm.xlu0 %223, %v213
  %v225 = vpop.permute.xlu0 %224
  %vm226 = vcmp.eq.s32.totalorder %v216, 1
  %vm227 = vcmp.eq.s32.totalorder %v219, 1
  %vm228 = vcmp.eq.s32.totalorder %v222, 1
  %vm229 = vcmp.eq.s32.totalorder %v225, 1
  %v230 = vsel %vm208, 1, 0
  %v231 = vsel %vm209, 1, 0
  %v232 = vlaneseq
  %v233 = vshrl.u32 %v232, 7
  %v234 = vsub.s32 0, %v233
  %v235 = vrot.slane %v230, %v234
  %v236 = vlaneseq
  %v237 = vshrl.u32 %v236, 7
  %v238 = vsub.s32 1, %v237
  %v239 = vrot.slane %v230, %v238
  %v240 = vlaneseq
  %v241 = vshrl.u32 %v240, 7
  %v242 = vsub.s32 0, %v241
  %v243 = vrot.slane %v231, %v242
  %v244 = vlaneseq
  %v245 = vshrl.u32 %v244, 7
  %v246 = vsub.s32 1, %v245
  %v247 = vrot.slane %v231, %v246
  %vm248 = vcmp.eq.s32.totalorder %v235, 1
  %vm249 = vcmp.eq.s32.totalorder %v239, 1
  %vm250 = vcmp.eq.s32.totalorder %v243, 1
  %vm251 = vcmp.eq.s32.totalorder %v247, 1
  %vm252 = vmand %vm226, %vm248
  %vm253 = vmand %vm226, %vm249
  %vm254 = vmand %vm227, %vm248
  %vm255 = vmand %vm227, %vm249
  %vm256 = vmand %vm228, %vm250
  %vm257 = vmand %vm228, %vm251
  %vm258 = vmand %vm229, %vm250
  %vm259 = vmand %vm229, %vm251
  %v260 = vsel %vm252, %v109, -1e+09
  %v261 = vsel %vm253, %v111, -1e+09
  %v262 = vsel %vm254, %v113, -1e+09
  %v263 = vsel %vm255, %v115, -1e+09
  %v264 = vsel %vm256, %v180, -1e+09
  %v265 = vsel %vm257, %v182, -1e+09
  %v266 = vsel %vm258, %v184, -1e+09
  %v267 = vsel %vm259, %v186, -1e+09
  %vm268 = vcmp.lt.f32.partialorder %v200, 0.0
  %vm269 = vcmp.lt.f32.partialorder %v201, 0.0
  %270 = vmax.xlane.f32.xlu0 %v260
  %v271 = vpop.xlane.xlu0 %270
  %272 = vmax.xlane.f32.xlu0 %v262
  %v273 = vpop.xlane.xlu0 %272
  %274 = vmax.xlane.f32.xlu0 %v264
  %v275 = vpop.xlane.xlu0 %274
  %276 = vmax.xlane.f32.xlu0 %v266
  %v277 = vpop.xlane.xlu0 %276
  %v278 = vsub.f32 %v260, %v271
  %v279 = vsub.f32 %v262, %v273
  %v280 = vsub.f32 %v264, %v275
  %v281 = vsub.f32 %v266, %v277
  %v282 = vmul.f32 %v278, 1.442695
  %v283 = vpow.pop %v282
  %v284 = vmul.f32 %v279, 1.442695
  %v285 = vpow.pop %v284
  %v286 = vmul.f32 %v280, 1.442695
  %v287 = vpow.pop %v286
  %v288 = vmul.f32 %v281, 1.442695
  %v289 = vpow.pop %v288
  %v290 = vsel %vm268, 1, 0
  %v291 = vsel %vm269, 1, 0
  %v292 = vlaneseq
  %v293 = vshrl.u32 %v292, 7
  %v294 = vsub.s32 0, %v293
  %v295 = vrot.slane %v290, %v294
  %v296 = vlaneseq
  %v297 = vshrl.u32 %v296, 7
  %v298 = vsub.s32 0, %v297
  %v299 = vrot.slane %v291, %v298
  %vm300 = vcmp.eq.s32.totalorder %v295, 1
  %vm301 = vcmp.eq.s32.totalorder %v299, 1
  %v302 = vsel %vm300, 0.0, %v283
  %v303 = vsel %vm300, 0.0, %v285
  %v304 = vsel %vm301, 0.0, %v287
  %v305 = vsel %vm301, 0.0, %v289
  %306 = vadd.xlane.f32.xlu0 %v302
  %v307 = vpop.xlane.xlu0 %306
  %308 = vadd.xlane.f32.xlu0 %v303
  %v309 = vpop.xlane.xlu0 %308
  %310 = vadd.xlane.f32.xlu0 %v304
  %v311 = vpop.xlane.xlu0 %310
  %312 = vadd.xlane.f32.xlu0 %v305
  %v313 = vpop.xlane.xlu0 %312
  %vm314 = vcmp.gt.f32.partialorder %v307, 0.0
  %vm315 = vcmp.gt.f32.partialorder %v309, 0.0
  %vm316 = vcmp.gt.f32.partialorder %v311, 0.0
  %vm317 = vcmp.gt.f32.partialorder %v313, 0.0
  %v318 = vsel %vm314, %v307, 1.0
  %v319 = vsel %vm315, %v309, 1.0
  %v320 = vsel %vm316, %v311, 1.0
  %v321 = vsel %vm317, %v313, 1.0
  %v322 = vrcp.pop %v318
  %v323 = vrcp.pop %v319
  %v324 = vrcp.pop %v320
  %v325 = vrcp.pop %v321
  %v326 = vmul.f32 %v302, %v322
  %v327 = vmul.f32 %v303, %v323
  %v328 = vmul.f32 %v304, %v324
  %v329 = vmul.f32 %v305, %v325
  %330 = vst [vmem:[%s5] sm:$0xff] %v326
  %331 = vst [vmem:[%s5 + $0x10] sm:$0xff] %v327
  %332 = vst [vmem:[%s5 + $0x20] sm:$0xff] %v328
  %333 = vst [vmem:[%s5 + $0x30] sm:$0xff] %v329
  %334 = vmax.xlane.f32.xlu0 %v261
  %v335 = vpop.xlane.xlu0 %334
  %336 = vmax.xlane.f32.xlu0 %v263
  %v337 = vpop.xlane.xlu0 %336
  %338 = vmax.xlane.f32.xlu0 %v265
  %v339 = vpop.xlane.xlu0 %338
  %340 = vmax.xlane.f32.xlu0 %v267
  %v341 = vpop.xlane.xlu0 %340
  %v342 = vsub.f32 %v261, %v335
  %v343 = vsub.f32 %v263, %v337
  %v344 = vsub.f32 %v265, %v339
  %v345 = vsub.f32 %v267, %v341
  %v346 = vmul.f32 %v342, 1.442695
  %v347 = vpow.pop %v346
  %v348 = vmul.f32 %v343, 1.442695
  %v349 = vpow.pop %v348
  %v350 = vmul.f32 %v344, 1.442695
  %v351 = vpow.pop %v350
  %v352 = vmul.f32 %v345, 1.442695
  %v353 = vpow.pop %v352
  %v354 = vrot.slane %v290, 1
  %v355 = vrot.slane %v291, 1
  %vm356 = vcmp.ne.s32.totalorder %v354, 0
  %vm357 = vcmp.ne.s32.totalorder %v355, 0
  %v358 = vsel %vm356, 1, 0
  %v359 = vsel %vm357, 1, 0
  %v360 = vlaneseq
  %v361 = vshrl.u32 %v360, 7
  %v362 = vsub.s32 0, %v361
  %v363 = vrot.slane %v358, %v362
  %v364 = vlaneseq
  %v365 = vshrl.u32 %v364, 7
  %v366 = vsub.s32 0, %v365
  %v367 = vrot.slane %v359, %v366
  %vm368 = vcmp.eq.s32.totalorder %v363, 1
  %vm369 = vcmp.eq.s32.totalorder %v367, 1
  %v370 = vsel %vm368, 0.0, %v347
  %v371 = vsel %vm368, 0.0, %v349
  %v372 = vsel %vm369, 0.0, %v351
  %v373 = vsel %vm369, 0.0, %v353
  %374 = vadd.xlane.f32.xlu0 %v370
  %v375 = vpop.xlane.xlu0 %374
  %376 = vadd.xlane.f32.xlu0 %v371
  %v377 = vpop.xlane.xlu0 %376
  %378 = vadd.xlane.f32.xlu0 %v372
  %v379 = vpop.xlane.xlu0 %378
  %380 = vadd.xlane.f32.xlu0 %v373
  %v381 = vpop.xlane.xlu0 %380
  %vm382 = vcmp.gt.f32.partialorder %v375, 0.0
  %vm383 = vcmp.gt.f32.partialorder %v377, 0.0
  %vm384 = vcmp.gt.f32.partialorder %v379, 0.0
  %vm385 = vcmp.gt.f32.partialorder %v381, 0.0
  %v386 = vsel %vm382, %v375, 1.0
  %v387 = vsel %vm383, %v377, 1.0
  %v388 = vsel %vm384, %v379, 1.0
  %v389 = vsel %vm385, %v381, 1.0
  %v390 = vrcp.pop %v386
  %v391 = vrcp.pop %v387
  %v392 = vrcp.pop %v388
  %v393 = vrcp.pop %v389
  %v394 = vmul.f32 %v370, %v390
  %v395 = vmul.f32 %v371, %v391
  %v396 = vmul.f32 %v372, %v392
  %v397 = vmul.f32 %v373, %v393
  %398 = vst [vmem:[%s5 + $0x8] sm:$0xff] %v394
  %399 = vst [vmem:[%s5 + $0x18] sm:$0xff] %v395
  %400 = vst [vmem:[%s5 + $0x28] sm:$0xff] %v396
  %401 = vst [vmem:[%s5 + $0x38] sm:$0xff] %v397
  // Predicated region
  $region22: #{forward.1} parent=0 // pred_check
    _
  $region23: #{forward.1} parent=0 // pred_check_branch
    %403 = sbr.rel (0) target = $region25
  $region24: #{forward.1} parent=0 // pred_region
    _
  $region25: #{forward.1} parent=0 // pred_fallthru
    _
  // Predicated region
  $region26: #{forward.1} parent=0 // pred_check
    _
  $region27: #{forward.1} parent=0 // pred_check_branch
    %405 = sbr.rel (0) target = $region29
  $region28: #{forward.1} parent=0 // pred_region
    _
  $region29: #{forward.1} parent=0 // pred_fallthru
    _

</llo_original>
